<compile_context>
chip_gen: v7x
topology: tpu7x:2x2x1
jax: 0.10.0
libtpu: 0.0.40
codegen_flags: <defaults>
</compile_context>

<pallas_src>
import functools

import jax
import jax.numpy as jnp
from jax.experimental import pallas as pl
from jax.experimental.pallas import tpu as pltpu


# ---------------------------------------------------------------------------
# Hardware detection / tiling helpers
# ---------------------------------------------------------------------------

def _detect_tpu():
    """Return (tensorcores_per_chip, physical_vmem_bytes) with safe fallbacks."""
    num_tc = 1
    vmem_phys = 64 << 20                      # conservative default (v7x-sized)
    try:
        kind = jax.devices()[0].device_kind.lower()
        if "v7" in kind:
            num_tc, vmem_phys = 2, 64 << 20   # 2 TCs, 64 MiB VMEM per TC
        elif "v5" in kind or "v6" in kind:
            num_tc, vmem_phys = 1, 128 << 20  # 1 TC, 128 MiB VMEM
    except Exception:
        pass
    return num_tc, vmem_phys


def _min_sublane(dtype):
    """Minimum multiple for a non-full second-to-last block dim, per dtype."""
    return {4: 8, 2: 16, 1: 32}.get(jnp.dtype(dtype).itemsize, 8)


def _pick_c_tile(c, num_tc, min_sub):
    """Channel tile: full C on 1-TC chips; a clean 2-way split on v7x."""
    if num_tc >= 2:
        half = c // num_tc
        if c % num_tc == 0 and half % min_sub == 0:
            return half
        # TODO(synk): pad C so the second TensorCore is never idle when C is
        # not cleanly splittable (padding costs an extra HBM pass here).
    return c


def _fast_c_tile(n, c, hw, itemsize, min_sub, base_c_tile, budget_bytes):
    """Largest channel tile whose resident slab fits the VMEM budget, or None.

    Budget accounts for double-buffered input+output blocks plus ~2 f32-sized
    temporaries used while computing statistics on the resident slab.
    """
    for ct in range(base_c_tile, 0, -1):
        if c % ct or (ct != c and ct % min_sub):
            continue
        slab = n * ct * hw
        live = 4 * slab * itemsize + 2 * slab * 4
        if live <= budget_bytes:
            return ct
    return None


def _pick_stream_tiles(n, c_tile, hw, itemsize, budget_bytes):
    """(n_tile, hw_tile) for the streaming path.

    Prefers a lane-dense full-H*W row tile; if even one N-row exceeds the
    budget (large spatial maps, small N) split H*W in multiples of 128.
    """
    for cand in range(n, 0, -1):
        if n % cand == 0 and cand * c_tile * hw * itemsize <= budget_bytes:
            return cand, hw
    for cand in range(hw, 127, -1):
        if hw % cand == 0 and cand % 128 == 0 and c_tile * cand * itemsize <= budget_bytes:
            return 1, cand
    # TODO(synk): pad H*W to a multiple of 128 for huge non-128-divisible maps.
    return 1, hw


def _chan_semantics(c_tiles, num_tc):
    if c_tiles >= 2 and num_tc >= 2:
        if c_tiles == num_tc:
            # Only core-parallel sharding actually splits a grid axis across
            # v7x's two TensorCores; fall back to "parallel" if unavailable.
            return getattr(pltpu, "CORE_PARALLEL", "parallel")
        return "parallel"
    return "arbitrary"


# ---------------------------------------------------------------------------
# Kernels
# ---------------------------------------------------------------------------

def _bn_resident_kernel(x_ref, w_ref, b_ref, o_ref, *, eps, inv_count):
    """Single-pass path: the whole (N, c_tile, H*W) slab is resident in VMEM.

    One HBM read + one HBM write per element (2x tensor traffic).
    """
    x = x_ref[...].astype(jnp.float32)                           # (N, ct, HW)
    s = jnp.sum(jnp.sum(x, axis=2, keepdims=True), axis=0, keepdims=True)
    ss = jnp.sum(jnp.sum(x * x, axis=2, keepdims=True), axis=0, keepdims=True)
    mean = s * inv_count
    var = jnp.maximum(ss * inv_count - mean * mean, 0.0)        # biased (BN train)
    scale = jax.lax.rsqrt(var + eps) * w_ref[...].astype(jnp.float32)
    shift = b_ref[...].astype(jnp.float32) - mean * scale
    o_ref[...] = (x * scale + shift).astype(o_ref.dtype)


def _bn_streaming_kernel(x_ref, w_ref, b_ref, o_ref,
                         mean_ref, m2_ref, scale_ref, shift_ref,
                         *, eps, tile_count, total_count):
    """Two-phase streaming path: phase 0 accumulates stats, phase 1 applies."""
    phase = pl.program_id(1)
    step = pl.program_id(2)
    nsteps = pl.num_programs(2)

    @pl.when(phase == 0)
    def _stats():
        @pl.when(step == 0)
        def _init():
            mean_ref[...] = jnp.zeros_like(mean_ref)
            m2_ref[...] = jnp.zeros_like(m2_ref)

        x = x_ref[...].astype(jnp.float32)                       # (nt, ct, hwt)
        # Tile-local sum / sum-of-squares (~2 VALU ops/elem vs 4 for an
        # explicit centered pass) keeps phase 0 HBM-bound for bf16 on v7x.
        tile_sum = jnp.sum(jnp.sum(x, axis=2, keepdims=True),
                           axis=0, keepdims=True)                # (1, ct, 1)
        tile_sumsq = jnp.sum(jnp.sum(x * x, axis=2, keepdims=True),
                             axis=0, keepdims=True)              # (1, ct, 1)
        tc = jnp.float32(tile_count)
        tile_mean = tile_sum * (1.0 / tile_count)
        tile_m2 = jnp.maximum(tile_sumsq - tc * tile_mean * tile_mean, 0.0)

        # Chan's parallel combine across uniform-count tiles (f32).
        count = tc * step.astype(jnp.float32)
        new_count = count + tc
        delta = tile_mean - mean_ref[...]
        mean_ref[...] = mean_ref[...] + delta * (tc / new_count)
        m2_ref[...] = (m2_ref[...] + tile_m2
                       + (delta * delta) * (count * tc / new_count))

        @pl.when(step == nsteps - 1)
        def _finalize():
            # Precompute scale/shift once so the apply pass is pure vld/FMA/vst.
            var = m2_ref[...] * (1.0 / total_count)              # biased (BN train)
            inv = jax.lax.rsqrt(var + eps)
            scale_ref[...] = inv * w_ref[...].astype(jnp.float32)
            shift_ref[...] = (b_ref[...].astype(jnp.float32)
                              - mean_ref[...] * scale_ref[...])

    @pl.when(phase == 1)
    def _apply():
        x = x_ref[...].astype(jnp.float32)
        o_ref[...] = (x * scale_ref[...] + shift_ref[...]).astype(o_ref.dtype)


# ---------------------------------------------------------------------------
# Wrapper
# ---------------------------------------------------------------------------

def norm_forward(x_nchw, weight, bias, eps=1e-5, *,
                 force_streaming=False, n_tile=None, hw_tile=None):
    """Test-time batch normalization (BatchNorm2d with batch statistics).

    x_nchw: (N, C, H, W)   weight, bias: (C,)
    Returns (N, C, H, W), same dtype as the input.
    """
    n, c, h, w = x_nchw.shape
    hw = h * w
    itemsize = x_nchw.dtype.itemsize
    eps = float(eps)

    # Free, contiguous reshapes -- no transpose, no extra HBM pass.
    x3 = x_nchw.reshape(n, c, hw)
    w3 = weight.reshape(1, c, 1)
    b3 = bias.reshape(1, c, 1)

    num_tc, vmem_phys = _detect_tpu()
    vmem_limit = int(min((vmem_phys * 3) // 4, 100 << 20))   # 48 MiB v7x / 96 MiB v5e,v6e
    min_sub = _min_sublane(x_nchw.dtype)
    c_tile = _pick_c_tile(c, num_tc, min_sub)

    def _params(sems):
        return pltpu.CompilerParams(dimension_semantics=sems,
                                    vmem_limit_bytes=vmem_limit)

    # ---- VMEM-resident single-pass fast path: 2x HBM traffic instead of 3x --
    if not (force_streaming or n_tile is not None or hw_tile is not None):
        fast_ct = _fast_c_tile(n, c, hw, itemsize, min_sub, c_tile,
                               budget_bytes=(vmem_limit * 4) // 5)
        if fast_ct is not None:
            c_tiles = c // fast_ct
            kernel = functools.partial(_bn_resident_kernel, eps=eps,
                                       inv_count=1.0 / float(n * hw))
            out3 = pl.pallas_call(
                kernel,
                out_shape=jax.ShapeDtypeStruct((n, c, hw), x_nchw.dtype),
                grid_spec=pltpu.PrefetchScalarGridSpec(
                    num_scalar_prefetch=0,
                    grid=(c_tiles,),
                    in_specs=[
                        pl.BlockSpec((n, fast_ct, hw), lambda ci: (0, ci, 0)),
                        pl.BlockSpec((1, fast_ct, 1), lambda ci: (0, ci, 0)),
                        pl.BlockSpec((1, fast_ct, 1), lambda ci: (0, ci, 0)),
                    ],
                    out_specs=pl.BlockSpec((n, fast_ct, hw),
                                           lambda ci: (0, ci, 0)),
                ),
                compiler_params=_params((_chan_semantics(c_tiles, num_tc),)),
            )(x3, w3, b3)
            return out3.reshape(n, c, h, w)

    # ---- two-phase streaming fallback (stats pass + apply pass) -------------
    budget = (6 << 20) if vmem_phys <= (64 << 20) else (8 << 20)
    if n_tile is None and hw_tile is None:
        n_tile, hw_tile = _pick_stream_tiles(n, c_tile, hw, itemsize, budget)
    else:
        n_tile = n if n_tile is None else n_tile
        hw_tile = hw if hw_tile is None else hw_tile

    assert n % n_tile == 0 and c % c_tile == 0 and hw % hw_tile == 0
    assert hw_tile == hw or hw_tile % 128 == 0, "lane tile must be 128-aligned"
    n_tiles = n // n_tile
    c_tiles = c // c_tile
    hw_tiles = hw // hw_tile
    steps = n_tiles * hw_tiles

    kernel = functools.partial(
        _bn_streaming_kernel, eps=eps,
        tile_count=n_tile * hw_tile, total_count=n * hw)

    out3 = pl.pallas_call(
        kernel,
        out_shape=jax.ShapeDtypeStruct((n, c, hw), x_nchw.dtype),
        grid_spec=pltpu.PrefetchScalarGridSpec(
            num_scalar_prefetch=0,
            grid=(c_tiles, 2, steps),
            in_specs=[
                pl.BlockSpec((n_tile, c_tile, hw_tile),
                             lambda ci, p, s: (s // hw_tiles, ci, s % hw_tiles)),
                pl.BlockSpec((1, c_tile, 1), lambda ci, p, s: (0, ci, 0)),
                pl.BlockSpec((1, c_tile, 1), lambda ci, p, s: (0, ci, 0)),
            ],
            # Pinned at block (0, ci, 0) through the stats phase (no writeback),
            # streamed during the apply phase; each output block written once.
            out_specs=pl.BlockSpec(
                (n_tile, c_tile, hw_tile),
                lambda ci, p, s: (p * (s // hw_tiles), ci, p * (s % hw_tiles))),
            scratch_shapes=[
                pltpu.VMEM((1, c_tile, 1), jnp.float32),   # running mean
                pltpu.VMEM((1, c_tile, 1), jnp.float32),   # running M2
                pltpu.VMEM((1, c_tile, 1), jnp.float32),   # scale
                pltpu.VMEM((1, c_tile, 1), jnp.float32),   # shift
            ],
        ),
        compiler_params=_params(
            (_chan_semantics(c_tiles, num_tc), "arbitrary", "arbitrary")),
    )(x3, w3, b3)

    return out3.reshape(n, c, h, w)


# ---------------------------------------------------------------------------
# Reference + self-test
# ---------------------------------------------------------------------------

def _reference(x_nchw, weight, bias, eps=1e-5):
    xf = x_nchw.astype(jnp.float32)
    mean = jnp.mean(xf, axis=(0, 2, 3), keepdims=True)
    var = jnp.mean((xf - mean) ** 2, axis=(0, 2, 3), keepdims=True)
    y = (xf - mean) / jnp.sqrt(var + eps)
    y = y * weight.reshape(1, -1, 1, 1) + bias.reshape(1, -1, 1, 1)
    return y.astype(x_nchw.dtype)


if __name__ == "__main__":
    key = jax.random.PRNGKey(0)
    N, C, H, W = 2, 4, 16, 16

    kx, _ = jax.random.split(key)
    x = jax.random.normal(kx, (N, C, H, W), dtype=jnp.float32) * 2.0 + 0.5

    # Deterministic affine parameters (BatchNorm2d weight/bias, shape (C,)).
    weight = jnp.linspace(0.5, 1.5, C, dtype=jnp.float32)
    bias = jnp.linspace(-0.2, 0.2, C, dtype=jnp.float32)

    ref = _reference(x, weight, bias, eps=1e-5)

    # 1) VMEM-resident single-pass fast path (default for tensors that fit).
    out = jax.block_until_ready(norm_forward(x, weight, bias, eps=1e-5))
    assert out.shape == (N, C, H, W)
    assert jnp.allclose(out, ref, atol=1e-4, rtol=1e-4)

    # 2) Two-phase streaming path with multiple row tiles (Chan combine).
    out2 = jax.block_until_ready(
        norm_forward(x, weight, bias, eps=1e-5, n_tile=1))
    assert jnp.allclose(out2, ref, atol=1e-4, rtol=1e-4)

    # 3) Streaming path with a 128-wide lane split of H*W (large-map fallback).
    out3 = jax.block_until_ready(
        norm_forward(x, weight, bias, eps=1e-5, n_tile=1, hw_tile=128))
    assert jnp.allclose(out3, ref, atol=1e-4, rtol=1e-4)

    print("KERNEL_OK")
</pallas_src>

<mosaic_0001>
module attributes {stable_mosaic.version = 11 : i64} {
  func.func @_bn_resident_kernel(%arg0: i32, %arg1: memref<2x4x256xf32, #tpu.memory_space<vmem>>, %arg2: memref<1x4x1xf32, #tpu.memory_space<vmem>>, %arg3: memref<1x4x1xf32, #tpu.memory_space<vmem>>, %arg4: memref<2x4x256xf32, #tpu.memory_space<vmem>>) attributes {dimension_semantics = [#tpu.dimension_semantics<arbitrary>], iteration_bounds = array<i64: 1>, scalar_prefetch = 0 : i64, scratch_operands = 0 : i64, tpu.core_type = #tpu.core_type<tc>, window_params = [{transform_indices = @transform_0, window_bounds = array<i64: 2, 4, 256>}, {transform_indices = @transform_1, window_bounds = array<i64: 1, 4, 1>}, {transform_indices = @transform_2, window_bounds = array<i64: 1, 4, 1>}, {transform_indices = @transform_3, window_bounds = array<i64: 2, 4, 256>}]} {
    %c0 = arith.constant 0 : index
    %c0_0 = arith.constant 0 : index
    %c0_1 = arith.constant 0 : index
    %0 = vector.load %arg1[%c0, %c0_0, %c0_1] : memref<2x4x256xf32, #tpu.memory_space<vmem>>, vector<2x4x256xf32>
    %cst = arith.constant dense<0.000000e+00> : vector<2x4xf32>
    %1 = vector.multi_reduction <add>, %0, %cst [2] : vector<2x4x256xf32> to vector<2x4xf32>
    %2 = vector.shape_cast %1 : vector<2x4xf32> to vector<2x4x1xf32>
    %cst_2 = arith.constant dense<0.000000e+00> : vector<4x1xf32>
    %3 = vector.multi_reduction <add>, %2, %cst_2 [0] : vector<2x4x1xf32> to vector<4x1xf32>
    %4 = vector.shape_cast %3 : vector<4x1xf32> to vector<1x4x1xf32>
    %5 = arith.mulf %0, %0 : vector<2x4x256xf32>
    %cst_3 = arith.constant dense<0.000000e+00> : vector<2x4xf32>
    %6 = vector.multi_reduction <add>, %5, %cst_3 [2] : vector<2x4x256xf32> to vector<2x4xf32>
    %7 = vector.shape_cast %6 : vector<2x4xf32> to vector<2x4x1xf32>
    %cst_4 = arith.constant dense<0.000000e+00> : vector<4x1xf32>
    %8 = vector.multi_reduction <add>, %7, %cst_4 [0] : vector<2x4x1xf32> to vector<4x1xf32>
    %9 = vector.shape_cast %8 : vector<4x1xf32> to vector<1x4x1xf32>
    %cst_5 = arith.constant 0.001953125 : f32
    %10 = vector.broadcast %cst_5 : f32 to vector<1x4x1xf32>
    %11 = arith.mulf %4, %10 : vector<1x4x1xf32>
    %cst_6 = arith.constant 0.001953125 : f32
    %12 = vector.broadcast %cst_6 : f32 to vector<1x4x1xf32>
    %13 = arith.mulf %9, %12 : vector<1x4x1xf32>
    %14 = arith.mulf %11, %11 : vector<1x4x1xf32>
    %15 = arith.subf %13, %14 : vector<1x4x1xf32>
    %cst_7 = arith.constant 0.000000e+00 : f32
    %16 = vector.broadcast %cst_7 : f32 to vector<1x4x1xf32>
    %17 = arith.maximumf %15, %16 : vector<1x4x1xf32>
    %cst_8 = arith.constant 9.99999974E-6 : f32
    %18 = vector.broadcast %cst_8 : f32 to vector<1x4x1xf32>
    %19 = arith.addf %17, %18 : vector<1x4x1xf32>
    %20 = math.rsqrt %19 : vector<1x4x1xf32>
    %c0_9 = arith.constant 0 : index
    %c0_10 = arith.constant 0 : index
    %c0_11 = arith.constant 0 : index
    %21 = vector.load %arg2[%c0_9, %c0_10, %c0_11] : memref<1x4x1xf32, #tpu.memory_space<vmem>>, vector<1x4x1xf32>
    %22 = arith.mulf %20, %21 : vector<1x4x1xf32>
    %c0_12 = arith.constant 0 : index
    %c0_13 = arith.constant 0 : index
    %c0_14 = arith.constant 0 : index
    %23 = vector.load %arg3[%c0_12, %c0_13, %c0_14] : memref<1x4x1xf32, #tpu.memory_space<vmem>>, vector<1x4x1xf32>
    %24 = arith.mulf %11, %22 : vector<1x4x1xf32>
    %25 = arith.subf %23, %24 : vector<1x4x1xf32>
    %26 = vector.broadcast %22 : vector<1x4x1xf32> to vector<2x4x256xf32>
    %27 = arith.mulf %0, %26 : vector<2x4x256xf32>
    %28 = vector.broadcast %25 : vector<1x4x1xf32> to vector<2x4x256xf32>
    %29 = arith.addf %27, %28 : vector<2x4x256xf32>
    %c0_15 = arith.constant 0 : index
    %c0_16 = arith.constant 0 : index
    %c0_17 = arith.constant 0 : index
    %30 = vector.load %arg4[%c0_15, %c0_16, %c0_17] : memref<2x4x256xf32, #tpu.memory_space<vmem>>, vector<2x4x256xf32>
    tpu.vector_store %arg4[%c0_15, %c0_16, %c0_17], %29 {strides = array<i32>} : memref<2x4x256xf32, #tpu.memory_space<vmem>>, vector<2x4x256xf32>,
    return
  }
  func.func @transform_0(%arg0: i32) -> (i32, i32, i32) {
    %c0_i32 = arith.constant 0 : i32
    %c0_i32_0 = arith.constant 0 : i32
    %c0_i32_1 = arith.constant 0 : i32
    return %c0_i32, %arg0, %c0_i32_0 : i32, i32, i32
  }
  func.func @transform_1(%arg0: i32) -> (i32, i32, i32) {
    %c0_i32 = arith.constant 0 : i32
    %c0_i32_0 = arith.constant 0 : i32
    %c0_i32_1 = arith.constant 0 : i32
    return %c0_i32, %arg0, %c0_i32_0 : i32, i32, i32
  }
  func.func @transform_2(%arg0: i32) -> (i32, i32, i32) {
    %c0_i32 = arith.constant 0 : i32
    %c0_i32_0 = arith.constant 0 : i32
    %c0_i32_1 = arith.constant 0 : i32
    return %c0_i32, %arg0, %c0_i32_0 : i32, i32, i32
  }
  func.func @transform_3(%arg0: i32) -> (i32, i32, i32) {
    %c0_i32 = arith.constant 0 : i32
    %c0_i32_0 = arith.constant 0 : i32
    %c0_i32_1 = arith.constant 0 : i32
    return %c0_i32, %arg0, %c0_i32_0 : i32, i32, i32
  }
}

</mosaic_0001>

<llo_original>
// kernel: tpu_custom_call.1
$region0: #{tpu_custom_call.1}
  #allocation0 [shape = 'u32[]', space=smem, size = 0x4, offset = 0x4, fixed_abs, tag = 'smem constant byte address 0x4 - core index']
  #allocation1 [shape = 'u32[144,128]{1,0:T(1,128)}', space=vmem, size = 0x12000, scoped, tag = 'internal scratch']
  %s0 = inlined_call_operand.hbm [shape: f32[2,4,256], index: 0, kind: input, shape index: {}]
  %s1 = inlined_call_operand.vmem [shape: f32[1,4,1], index: 1, kind: input, shape index: {}]
  %s2 = inlined_call_operand.vmem [shape: f32[1,4,1], index: 2, kind: input, shape index: {}]
  %s3 = inlined_call_operand.hbm [shape: f32[2,4,256], index: 3, kind: output, shape index: {}]
  %s4 = sld [smem:[#allocation0]]
  $region26: #{tpu_custom_call.1} parent=0
    _
  %s6 = ssub.s32 1, %s4
  %s7 = scalar_select 0, %s6, %s4
  $region1: #{tpu_custom_call.1} parent=0
    #allocation2 [shape = 'u8[8192]{0}', space=vmem, size = 0x2000, scoped, tag = 'input window, operand 0, single buffered']
    #allocation3 [shape = 's32[1]{0}', space=sflag, size = 0x4, scoped, tag = 'scoped memory for tpu_custom_call.1']
    #allocation4 [shape = 's32[1]{0}', space=sflag, size = 0x4, scoped, tag = 'scoped memory for tpu_custom_call.1']
    #allocation5 [shape = 'u8[8192]{0}', space=vmem, size = 0x2000, scoped, tag = 'output window, operand 0, single buffered']
    %8 = vsyncpa [#allocation3], 0
    %9 = vsyncpa [#allocation4], 0
    // Predicated region
    $region2: #{tpu_custom_call.1} parent=1 // pred_check
      _
    $region3: #{tpu_custom_call.1} parent=1 // pred_check_branch
      %11 = sbr.rel (0) target = $region5
    $region4: #{tpu_custom_call.1} parent=1 // pred_region
      %s13 = ssub.s32 256, 256
      %14 = vsyncadd [#allocation3], %s13
      %s15 = sshll.u32 [#allocation2], 4
      %s16 = int_to_ptr.vmem [resolvable:$true] %s15
      %21 = dma.hbm_to_vmem [thread:$0]  %s0, 256, %s16, [#allocation3], 128, 128, 8
    $region5: #{tpu_custom_call.1} parent=1 // pred_fallthru
      _
    // Predicated region
    $region6: #{tpu_custom_call.1} parent=1 // pred_check
      _
    $region7: #{tpu_custom_call.1} parent=1 // pred_check_branch
      %23 = sbr.rel (0) target = $region9
    $region8: #{tpu_custom_call.1} parent=1 // pred_region
      _
    $region9: #{tpu_custom_call.1} parent=1 // pred_fallthru
      _
    // Predicated region
    $region10: #{tpu_custom_call.1} parent=1 // pred_check
      _
    $region11: #{tpu_custom_call.1} parent=1 // pred_check_branch
      %25 = sbr.rel (0) target = $region13
    $region12: #{tpu_custom_call.1} parent=1 // pred_region
      _
    $region13: #{tpu_custom_call.1} parent=1 // pred_fallthru
      _
    // Predicated region
    $region14: #{tpu_custom_call.1} parent=1 // pred_check
      _
    $region15: #{tpu_custom_call.1} parent=1 // pred_check_branch
      %27 = sbr.rel (0) target = $region17
    $region16: #{tpu_custom_call.1} parent=1 // pred_region
      %28 = dma.done [#allocation3], 256
    $region17: #{tpu_custom_call.1} parent=1 // pred_fallthru
      _
    %v29 = vld [vmem:[#allocation2] sm:$0xff]
    %v30 = vld [vmem:[#allocation2 + $0x8] sm:$0xff]
    %v33 = vcombine.high %v29, %v29
    %v34 = vcombine.high %v30, %v30
    %vm37 = vcmask 1043456
    %v38 = vsel %vm37, %v29, 0.0
    %v39 = vsel %vm37, %v33, 0.0
    %v40 = vadd.f32 %v38, %v39
    %41 = vadd.xlane.f32.xlu0 %v40
    %v42 = vpop.xlane.xlu0 %41
    %v43 = vsel %vm37, %v30, 0.0
    %v44 = vsel %vm37, %v34, 0.0
    %v45 = vadd.f32 %v43, %v44
    %46 = vadd.xlane.f32.xlu0 %v45
    %v47 = vpop.xlane.xlu0 %46
    %v48 = vsel %vm37, %v42, 0.0
    %v49 = vsel %vm37, %v47, 0.0
    %v50 = vadd.f32 %v48, %v49
    %v51 = vmul.f32 %v29, %v29
    %v52 = vmul.f32 %v30, %v30
    %v55 = vcombine.high %v51, %v51
    %v56 = vcombine.high %v52, %v52
    %v59 = vsel %vm37, %v51, 0.0
    %v60 = vsel %vm37, %v55, 0.0
    %v61 = vadd.f32 %v59, %v60
    %62 = vadd.xlane.f32.xlu0 %v61
    %v63 = vpop.xlane.xlu0 %62
    %v64 = vsel %vm37, %v52, 0.0
    %v65 = vsel %vm37, %v56, 0.0
    %v66 = vadd.f32 %v64, %v65
    %67 = vadd.xlane.f32.xlu0 %v66
    %v68 = vpop.xlane.xlu0 %67
    %v69 = vsel %vm37, %v63, 0.0
    %v70 = vsel %vm37, %v68, 0.0
    %v71 = vadd.f32 %v69, %v70
    %v72 = vmul.f32 %v50, 0.001953125
    %v73 = vmul.f32 %v71, 0.001953125
    %v74 = vmul.f32 %v72, %v72
    %v75 = vsub.f32 %v73, %v74
    %v76 = vmax.f32 %v75, 0.0
    %v77 = vadd.f32 %v76, 1e-05
    %v78 = vrsqrt.pop %v77
    %v79 = vld [vmem:[%s1] sm:$0xf]
    %v80 = vmul.f32 %v78, %v79
    %v81 = vld [vmem:[%s2] sm:$0xf]
    %v82 = vmul.f32 %v72, %v80
    %v83 = vsub.f32 %v81, %v82
    %85 = vset.pattern.permute.xlu0 0
    %86 = vperm.xlu0 %85, %v80
    %v87 = vpop.permute.xlu0 %86
    %v89 = vunpack.c.l.s4 839922192
    %v90 = vunpack.c.0.s8 %v89
    %v91 = vlaneseq
    %v92 = vshrl.u32 %v91, 7
    %v93 = vsub.s32 %v90, %v92
    %v94 = vrot.slane %v87, %v93
    %v96 = vmul.f32 %v29, %v94
    %v97 = vmul.f32 %v30, %v94
    %99 = vset.pattern.permute.xlu0 0
    %100 = vperm.xlu0 %99, %v83
    %v101 = vpop.permute.xlu0 %100
    %v103 = vunpack.c.l.s4 839922192
    %v104 = vunpack.c.0.s8 %v103
    %v105 = vlaneseq
    %v106 = vshrl.u32 %v105, 7
    %v107 = vsub.s32 %v104, %v106
    %v108 = vrot.slane %v101, %v107
    %v110 = vadd.f32 %v96, %v108
    %v111 = vadd.f32 %v97, %v108
    %112 = vst [vmem:[#allocation5] sm:$0xff] %v110
    %113 = vst [vmem:[#allocation5 + $0x8] sm:$0xff] %v111
    // Predicated region
    $region18: #{tpu_custom_call.1} parent=1 // pred_check
      _
    $region19: #{tpu_custom_call.1} parent=1 // pred_check_branch
      %115 = sbr.rel (0) target = $region21
    $region20: #{tpu_custom_call.1} parent=1 // pred_region
      %s117 = ssub.s32 256, 256
      %118 = vsyncadd [#allocation4], %s117
      %s119 = sshll.u32 [#allocation5], 4
      %s120 = int_to_ptr.vmem [resolvable:$true] %s119
      %125 = dma.vmem_to_hbm [thread:$0]  %s120, 256, %s3, [#allocation4], 128, 128, 8
    $region21: #{tpu_custom_call.1} parent=1 // pred_fallthru
      _
    // Predicated region
    $region22: #{tpu_custom_call.1} parent=1 // pred_check
      _
    $region23: #{tpu_custom_call.1} parent=1 // pred_check_branch
      %127 = sbr.rel (0) target = $region25
    $region24: #{tpu_custom_call.1} parent=1 // pred_region
      %128 = dma.done [#allocation4], 256
    $region25: #{tpu_custom_call.1} parent=1 // pred_fallthru
      _
    %129 = vsyncpa [#allocation3], 1
    %130 = vsyncpa [#allocation4], 1

</llo_original>
